<compile_context>
chip_gen: v7x
topology: tpu7x:2x2x1
jax: 0.10.0
libtpu: 0.0.40
codegen_flags: <defaults>
</compile_context>

<pallas_src>
import functools

import jax
import jax.numpy as jnp
import numpy as np
from jax import lax
from jax.experimental import pallas as pl
from jax.experimental.pallas import tpu as pltpu

EXPANSION = 4
BN_EPS = 1e-5
LANE = 128                         # pad channel dims to multiples of 128 (lane-dense)
_VMEM_LIMIT = 48 * 1024 * 1024     # scoped-VMEM cap, safe on v5e/v6e/v7x
_MM_TILE_ROWS = 512                # target M tile for the 1x1 (matmul) kernels
_CONV_TILE_ROWS = 512              # target (TH*Wo) tile for the 3x3 kernel


def _round_up(n, m):
    return ((n + m - 1) // m) * m


def _pad_last(a, mult=LANE):
    pad = (-a.shape[-1]) % mult
    if pad == 0:
        return a
    return jnp.pad(a, [(0, 0)] * (a.ndim - 1) + [(0, pad)])


# ----------------------------------------------------------------------------
# Kernels
# ----------------------------------------------------------------------------
def _mm_bn_kernel(x_ref, w_ref, scale_ref, bias_ref, o_ref, *, relu):
    """o = [relu]((x @ w) * scale + bias).  x:(TM,Cin) bf16, w:(Cin,Cout) bf16."""
    acc = jnp.dot(x_ref[...], w_ref[...], preferred_element_type=jnp.float32)
    out = acc * scale_ref[...] + bias_ref[...]
    if relu:
        out = jnp.maximum(out, 0.0)
    o_ref[...] = out.astype(o_ref.dtype)


def _mm_bn_add_relu_kernel(x_ref, res_ref, w_ref, scale_ref, bias_ref, o_ref):
    """conv3 + bn3 + identity residual (kept f32) + relu."""
    acc = jnp.dot(x_ref[...], w_ref[...], preferred_element_type=jnp.float32)
    out = acc * scale_ref[...] + bias_ref[...] + res_ref[...].astype(jnp.float32)
    o_ref[...] = jnp.maximum(out, 0.0).astype(o_ref.dtype)


def _mm_bn_proj_add_relu_kernel(x_ref, xs_ref, w_ref, scale_ref, bias_ref,
                                ws_ref, ss_ref, bs_ref, o_ref):
    """conv3+bn3 fused with the projection shortcut (1x1 conv + bn) + add + relu.
    Two matmuls share one f32 accumulator and one HBM write per tile."""
    out = jnp.dot(x_ref[...], w_ref[...], preferred_element_type=jnp.float32)
    out = out * scale_ref[...] + bias_ref[...]
    sc = jnp.dot(xs_ref[...], ws_ref[...], preferred_element_type=jnp.float32)
    out = out + sc * ss_ref[...] + bs_ref[...]
    o_ref[...] = jnp.maximum(out, 0.0).astype(o_ref.dtype)


def _conv3x3_bn_relu_kernel(ph_ref, w_ref, scale_ref, bias_ref, o_ref, col_ref,
                            *, TH, Wo, stride, Cp):
    """3x3 conv (stride baked into the phase-split input) + folded BN + ReLU.

    ph_ref : (S*S, Hq, Wq, Cp)  zero-padded, phase-split input of one image (bf16)
    w_ref  : (9*Cp, Cop)        weight flattened for im2col (bf16)
    o_ref  : (TH*Wo, Cop)       lane-dense 2D output tile
    col_ref: (TH*Wo, 9*Cp)      VMEM im2col scratch (bf16) -> single MXU matmul
    """
    i = pl.program_id(1)
    r_base = i * TH
    for k in range(9):                              # static unroll over taps
        dy, dx = k // 3, k % 3
        p = (dy % stride) * stride + (dx % stride)  # phase holding this tap
        patch = ph_ref[p,
                       pl.ds(r_base + dy // stride, TH),
                       pl.ds(dx // stride, Wo), :]              # (TH, Wo, Cp)
        col_ref[:, k * Cp:(k + 1) * Cp] = patch.reshape(TH * Wo, Cp)
    acc = jnp.dot(col_ref[...], w_ref[...], preferred_element_type=jnp.float32)
    out = acc * scale_ref[...] + bias_ref[...]
    o_ref[...] = jnp.maximum(out, 0.0).astype(o_ref.dtype)


# ----------------------------------------------------------------------------
# pallas_call wrappers
# ----------------------------------------------------------------------------
def _row_tile(M, target):
    tm = max(8, _round_up(min(target, M), 8))
    return tm, _round_up(M, tm)


def _call_rowtiled(kernel, row_inputs, full_inputs, cout, out_dtype,
                   target=_MM_TILE_ROWS):
    """Launch kernel(row_refs..., full_refs..., o_ref) on a 1-D grid tiled over
    rows with auto-pipelined (double-buffered) DMAs."""
    M = row_inputs[0].shape[0]
    tm, Mp = _row_tile(M, target)
    if Mp != M:
        row_inputs = [jnp.pad(r, ((0, Mp - M), (0, 0))) for r in row_inputs]
    in_specs = [pl.BlockSpec((tm, r.shape[1]), lambda i: (i, 0)) for r in row_inputs]
    in_specs += [pl.BlockSpec(f.shape, lambda i: (0, 0)) for f in full_inputs]
    out = pl.pallas_call(
        kernel,
        out_shape=jax.ShapeDtypeStruct((Mp, cout), out_dtype),
        grid=(Mp // tm,),
        in_specs=in_specs,
        out_specs=pl.BlockSpec((tm, cout), lambda i: (i, 0)),
        compiler_params=pltpu.CompilerParams(
            dimension_semantics=("parallel",),      # both TensorCores on v7x
            vmem_limit_bytes=_VMEM_LIMIT),
    )(*row_inputs, *full_inputs)
    return out[:M] if Mp != M else out


def _pick_row_tile_3x3(Ho, Wo, target=_CONV_TILE_ROWS):
    for th in range(Ho, 0, -1):
        if Ho % th == 0 and th * Wo <= target and (th * Wo) % 8 == 0:
            return th
    return Ho  # small-image fallback: whole image per grid step


def _conv3x3_bn_relu(x_nhwc, w_flat, scale, bias, stride):
    """x_nhwc: (N,H,W,Cp) bf16 -> (N*Ho*Wo, Cop) bf16 (stride handled in-kernel)."""
    N, H, W, Cp = x_nhwc.shape
    Cop = w_flat.shape[1]
    Ho = (H - 1) // stride + 1
    Wo = (W - 1) // stride + 1

    # TODO(synk): fold the zero padding + phase split into the kernel (halo /
    # masked edge loads) to save this extra HBM round trip of the activation.
    xp = jnp.pad(x_nhwc, ((0, 0), (1, 1), (1, 1), (0, 0)))
    if stride == 1:
        phases = xp[:, None]                                  # (N,1,H+2,W+2,Cp)
    else:
        assert stride == 2 and H % 2 == 0 and W % 2 == 0
        phases = jnp.stack([xp[:, ry::2, rx::2, :]
                            for ry in range(2) for rx in range(2)], axis=1)
    s2, Hq, Wq = phases.shape[1], phases.shape[2], phases.shape[3]
    phases = phases.reshape(N * s2, Hq, Wq, Cp)

    TH = _pick_row_tile_3x3(Ho, Wo)
    n_row_tiles = Ho // TH
    tm = TH * Wo

    def out_index(n, i):
        return (n * n_row_tiles + i, 0)

    kernel = functools.partial(_conv3x3_bn_relu_kernel,
                               TH=TH, Wo=Wo, stride=stride, Cp=Cp)
    out = pl.pallas_call(
        kernel,
        out_shape=jax.ShapeDtypeStruct((N * Ho * Wo, Cop), jnp.bfloat16),
        grid=(N, n_row_tiles),
        in_specs=[
            pl.BlockSpec((s2, Hq, Wq, Cp), lambda n, i: (n, 0, 0, 0)),
            pl.BlockSpec((9 * Cp, Cop), lambda n, i: (0, 0)),
            pl.BlockSpec((1, Cop), lambda n, i: (0, 0)),
            pl.BlockSpec((1, Cop), lambda n, i: (0, 0)),
        ],
        out_specs=pl.BlockSpec((tm, Cop), out_index),
        scratch_shapes=[pltpu.VMEM((tm, 9 * Cp), jnp.bfloat16)],
        compiler_params=pltpu.CompilerParams(
            dimension_semantics=("parallel", "arbitrary"),
            vmem_limit_bytes=_VMEM_LIMIT),
    )(phases, w_flat, scale, bias)
    return out, Ho, Wo


# ----------------------------------------------------------------------------
# Bottleneck forward (glue)
# ----------------------------------------------------------------------------
def bottleneck_forward(x_nchw, params, stride=1):
    N, Cin, H, W = x_nchw.shape
    C4 = params["c4"]
    x = jnp.transpose(x_nchw, (0, 2, 3, 1)).astype(jnp.float32)       # NHWC
    xpad = _pad_last(x)                                               # (N,H,W,Cinp)
    Cinp = xpad.shape[-1]
    Cmidp = params["w1"].shape[1]
    C4p = params["w3"].shape[1]

    # conv1 (1x1) + bn1 + relu  (bf16 matmul, f32 epilogue, no dummy residual)
    M = N * H * W
    x2d = xpad.reshape(M, Cinp).astype(jnp.bfloat16)
    out1 = _call_rowtiled(functools.partial(_mm_bn_kernel, relu=True),
                          [x2d], [params["w1"], params["s1"], params["b1"]],
                          Cmidp, jnp.bfloat16)
    out1 = out1.reshape(N, H, W, Cmidp)

    # conv2 (3x3, stride, pad 1) + bn2 + relu — stride in-kernel, im2col scratch
    out2_2d, Ho, Wo = _conv3x3_bn_relu(out1, params["w2"], params["s2"],
                                       params["b2"], stride)
    Ms = N * Ho * Wo

    # conv3 (1x1) + bn3 + shortcut + add + relu, fully fused per M tile
    if "ws" in params:                      # projection shortcut
        xs2d = (xpad[:, ::stride, ::stride, :]
                .reshape(Ms, Cinp).astype(jnp.bfloat16))
        out3 = _call_rowtiled(
            _mm_bn_proj_add_relu_kernel, [out2_2d, xs2d],
            [params["w3"], params["s3"], params["b3"],
             params["ws"], params["ss"], params["bs"]],
            C4p, jnp.float32)
    else:                                   # identity shortcut
        assert stride == 1 and Cin == C4, \
            "identity shortcut requires stride==1 and in_channels == 4*out_channels"
        res2d = xpad.reshape(Ms, Cinp)      # residual stays in f32
        out3 = _call_rowtiled(
            _mm_bn_add_relu_kernel, [out2_2d, res2d],
            [params["w3"], params["s3"], params["b3"]],
            C4p, jnp.float32)

    out3 = out3.reshape(N, Ho, Wo, C4p)[..., :C4]
    return jnp.transpose(out3, (0, 3, 1, 2))                          # NCHW


# ----------------------------------------------------------------------------
# Parameter construction (mirrors nn.Conv2d / nn.BatchNorm2d shapes)
# ----------------------------------------------------------------------------
def _fold_bn(gamma, beta, mean, var):
    scale = gamma / jnp.sqrt(var + BN_EPS)
    bias = beta - mean * scale
    return scale, bias


def make_params(key, in_channels, out_channels, stride):
    """Returns (raw torch-layout params for the reference, kernel-ready params)."""
    c4 = out_channels * EXPANSION
    ks = jax.random.split(key, 8)

    def bn_raw(k, c):
        k1, k2, k3, k4 = jax.random.split(k, 4)
        return (jax.random.normal(k1, (c,)) * 0.1 + 1.0,
                jax.random.normal(k2, (c,)) * 0.1,
                jax.random.normal(k3, (c,)) * 0.1,
                jax.random.uniform(k4, (c,), minval=0.5, maxval=1.5))

    raw = {
        "conv1_w": jax.random.normal(ks[0], (out_channels, in_channels, 1, 1)) * 0.1,
        "conv2_w": jax.random.normal(ks[1], (out_channels, out_channels, 3, 3)) * 0.1,
        "conv3_w": jax.random.normal(ks[2], (c4, out_channels, 1, 1)) * 0.1,
        "bn1": bn_raw(ks[3], out_channels),
        "bn2": bn_raw(ks[4], out_channels),
        "bn3": bn_raw(ks[5], c4),
    }
    if stride != 1 or in_channels != c4:
        raw["convs_w"] = jax.random.normal(ks[6], (c4, in_channels, 1, 1)) * 0.1
        raw["bns"] = bn_raw(ks[7], c4)

    cinp = _round_up(in_channels, LANE)
    cmidp = _round_up(out_channels, LANE)
    c4p = _round_up(c4, LANE)

    def fold_pad(stats, cpad):
        s, b = _fold_bn(*stats)
        s = jnp.pad(s, (0, cpad - s.shape[0]))[None, :].astype(jnp.float32)
        b = jnp.pad(b, (0, cpad - b.shape[0]))[None, :].astype(jnp.float32)
        return s, b

    p = {"c4": c4}
    w1 = jnp.pad(raw["conv1_w"][:, :, 0, 0],
                 ((0, cmidp - out_channels), (0, cinp - in_channels)))
    p["w1"] = jnp.transpose(w1).astype(jnp.bfloat16)                  # (Cinp, Cmidp)
    p["s1"], p["b1"] = fold_pad(raw["bn1"], cmidp)

    w2 = jnp.pad(raw["conv2_w"], ((0, cmidp - out_channels),
                                  (0, cmidp - out_channels), (0, 0), (0, 0)))
    w2 = jnp.transpose(w2, (2, 3, 1, 0)).reshape(9 * cmidp, cmidp)    # im2col layout
    p["w2"] = w2.astype(jnp.bfloat16)
    p["s2"], p["b2"] = fold_pad(raw["bn2"], cmidp)

    w3 = jnp.pad(raw["conv3_w"][:, :, 0, 0],
                 ((0, c4p - c4), (0, cmidp - out_channels)))
    p["w3"] = jnp.transpose(w3).astype(jnp.bfloat16)                  # (Cmidp, C4p)
    p["s3"], p["b3"] = fold_pad(raw["bn3"], c4p)

    if "convs_w" in raw:
        ws = jnp.pad(raw["convs_w"][:, :, 0, 0],
                     ((0, c4p - c4), (0, cinp - in_channels)))
        p["ws"] = jnp.transpose(ws).astype(jnp.bfloat16)              # (Cinp, C4p)
        p["ss"], p["bs"] = fold_pad(raw["bns"], c4p)
    return raw, p


# ----------------------------------------------------------------------------
# Pure-JAX reference (PyTorch eval-mode forward, same bf16/f32 matmul precision)
# ----------------------------------------------------------------------------
def ref_bottleneck(x, raw, stride):
    def conv(a, w, stride=1, padding=0):
        return lax.conv_general_dilated(
            a.astype(jnp.bfloat16), w.astype(jnp.bfloat16),
            (stride, stride), [(padding, padding)] * 2,
            dimension_numbers=("NCHW", "OIHW", "NCHW"),
            preferred_element_type=jnp.float32)

    def bn(y, stats):
        g, b, m, v = stats
        inv = 1.0 / jnp.sqrt(v + BN_EPS)
        return ((y - m[None, :, None, None]) * (inv * g)[None, :, None, None]
                + b[None, :, None, None])

    out = jax.nn.relu(bn(conv(x, raw["conv1_w"]), raw["bn1"]))
    out = jax.nn.relu(bn(conv(out, raw["conv2_w"], stride, 1), raw["bn2"]))
    out = bn(conv(out, raw["conv3_w"]), raw["bn3"])
    sc = (bn(conv(x, raw["convs_w"], stride), raw["bns"])
          if "convs_w" in raw else x)
    return jax.nn.relu(out + sc)


# ----------------------------------------------------------------------------
if __name__ == "__main__":
    key = jax.random.PRNGKey(0)
    kx, k1, k2, k3 = jax.random.split(key, 4)

    N, H, W = 2, 32, 32
    configs = [                 # (in_channels, out_channels, stride, key)
        (16, 16, 1, k1),        # projection shortcut (channel expansion)
        (16, 16, 2, k2),        # projection shortcut + stride 2
        (64, 16, 1, k3),        # identity shortcut
    ]
    for idx, (cin, cmid, stride, kp) in enumerate(configs):
        x = jax.random.normal(jax.random.fold_in(kx, idx), (N, cin, H, W),
                              dtype=jnp.float32)
        raw, params = make_params(kp, cin, cmid, stride)
        out = jax.block_until_ready(bottleneck_forward(x, params, stride=stride))
        ref = jax.block_until_ready(ref_bottleneck(x, raw, stride))
        np.testing.assert_allclose(np.asarray(out), np.asarray(ref),
                                   rtol=2e-2, atol=2e-2)
    print("KERNEL_OK")
</pallas_src>

<mosaic_0001>
module attributes {stable_mosaic.version = 11 : i64} {
  func.func @_mm_bn_kernel(%arg0: i32, %arg1: memref<512x128xbf16, #tpu.memory_space<vmem>>, %arg2: memref<128x128xbf16, #tpu.memory_space<vmem>>, %arg3: memref<1x128xf32, #tpu.memory_space<vmem>>, %arg4: memref<1x128xf32, #tpu.memory_space<vmem>>, %arg5: memref<512x128xbf16, #tpu.memory_space<vmem>>) attributes {dimension_semantics = [#tpu.dimension_semantics<parallel>], iteration_bounds = array<i64: 4>, scalar_prefetch = 0 : i64, scratch_operands = 0 : i64, tpu.core_type = #tpu.core_type<tc>, window_params = [{transform_indices = @transform_0, window_bounds = array<i64: 512, 128>}, {pipeline_mode = #tpu.pipeline_mode<synchronous>, transform_indices = @transform_1, window_bounds = array<i64: 128, 128>}, {pipeline_mode = #tpu.pipeline_mode<synchronous>, transform_indices = @transform_2, window_bounds = array<i64: 1, 128>}, {pipeline_mode = #tpu.pipeline_mode<synchronous>, transform_indices = @transform_3, window_bounds = array<i64: 1, 128>}, {transform_indices = @transform_4, window_bounds = array<i64: 512, 128>}]} {
    %c0 = arith.constant 0 : index
    %c0_0 = arith.constant 0 : index
    %0 = vector.load %arg1[%c0, %c0_0] : memref<512x128xbf16, #tpu.memory_space<vmem>>, vector<512x128xbf16>
    %c0_1 = arith.constant 0 : index
    %c0_2 = arith.constant 0 : index
    %1 = vector.load %arg2[%c0_1, %c0_2] : memref<128x128xbf16, #tpu.memory_space<vmem>>, vector<128x128xbf16>
    %cst = arith.constant dense<0.000000e+00> : vector<512x128xf32>
    %2 = tpu.matmul %0, %1, %cst {dimension_numbers = #tpu.dot_dimension_numbers<[1], [0], [0], [1], [0, 0, 1, 1], [], []>} : vector<512x128xbf16>, vector<128x128xbf16>, vector<512x128xf32> -> vector<512x128xf32>
    %c0_3 = arith.constant 0 : index
    %c0_4 = arith.constant 0 : index
    %3 = vector.load %arg3[%c0_3, %c0_4] : memref<1x128xf32, #tpu.memory_space<vmem>>, vector<1x128xf32>
    %4 = vector.broadcast %3 : vector<1x128xf32> to vector<512x128xf32>
    %5 = arith.mulf %2, %4 : vector<512x128xf32>
    %c0_5 = arith.constant 0 : index
    %c0_6 = arith.constant 0 : index
    %6 = vector.load %arg4[%c0_5, %c0_6] : memref<1x128xf32, #tpu.memory_space<vmem>>, vector<1x128xf32>
    %7 = vector.broadcast %6 : vector<1x128xf32> to vector<512x128xf32>
    %8 = arith.addf %5, %7 : vector<512x128xf32>
    %cst_7 = arith.constant 0.000000e+00 : f32
    %9 = vector.broadcast %cst_7 : f32 to vector<512x128xf32>
    %10 = arith.maximumf %8, %9 : vector<512x128xf32>
    %11 = arith.truncf %10 : vector<512x128xf32> to vector<512x128xbf16>
    %c0_8 = arith.constant 0 : index
    %c0_9 = arith.constant 0 : index
    %12 = vector.load %arg5[%c0_8, %c0_9] : memref<512x128xbf16, #tpu.memory_space<vmem>>, vector<512x128xbf16>
    tpu.vector_store %arg5[%c0_8, %c0_9], %11 {strides = array<i32>} : memref<512x128xbf16, #tpu.memory_space<vmem>>, vector<512x128xbf16>,
    return
  }
  func.func @transform_0(%arg0: i32) -> (i32, i32) {
    %c0_i32 = arith.constant 0 : i32
    %c0_i32_0 = arith.constant 0 : i32
    return %arg0, %c0_i32 : i32, i32
  }
  func.func @transform_1(%arg0: i32) -> (i32, i32) {
    %c0_i32 = arith.constant 0 : i32
    %c0_i32_0 = arith.constant 0 : i32
    %c0_i32_1 = arith.constant 0 : i32
    return %c0_i32, %c0_i32_0 : i32, i32
  }
  func.func @transform_2(%arg0: i32) -> (i32, i32) {
    %c0_i32 = arith.constant 0 : i32
    %c0_i32_0 = arith.constant 0 : i32
    %c0_i32_1 = arith.constant 0 : i32
    return %c0_i32, %c0_i32_0 : i32, i32
  }
  func.func @transform_3(%arg0: i32) -> (i32, i32) {
    %c0_i32 = arith.constant 0 : i32
    %c0_i32_0 = arith.constant 0 : i32
    %c0_i32_1 = arith.constant 0 : i32
    return %c0_i32, %c0_i32_0 : i32, i32
  }
  func.func @transform_4(%arg0: i32) -> (i32, i32) {
    %c0_i32 = arith.constant 0 : i32
    %c0_i32_0 = arith.constant 0 : i32
    return %arg0, %c0_i32 : i32, i32
  }
}

</mosaic_0001>

<llo_original>
// kernel: tpu_custom_call.1
$region0: #{tpu_custom_call.1}
  #allocation0 [shape = 'u32[]', space=smem, size = 0x4, offset = 0x4, fixed_abs, tag = 'smem constant byte address 0x4 - core index']
  #allocation1 [shape = 'u32[144,128]{1,0:T(1,128)}', space=vmem, size = 0x12000, scoped, tag = 'internal scratch']
  %s0 = inlined_call_operand.hbm [shape: bf16[2048,128], index: 0, kind: input, shape index: {}]
  %s1 = inlined_call_operand.hbm [shape: bf16[128,128], index: 1, kind: input, shape index: {}]
  %s2 = inlined_call_operand.vmem [shape: f32[1,128], index: 2, kind: input, shape index: {}]
  %s3 = inlined_call_operand.vmem [shape: f32[1,128], index: 3, kind: input, shape index: {}]
  %s4 = inlined_call_operand.hbm [shape: bf16[2048,128], index: 4, kind: output, shape index: {}]
  %s5 = sld [smem:[#allocation0]]
  $region57: #{tpu_custom_call.1} parent=0
    _
  %s7 = ssub.s32 1, %s5
  %s8 = scalar_select 0, %s7, %s5
  $region1: #{tpu_custom_call.1} parent=0
    #allocation2 [shape = 'u8[262144]{0}', space=vmem, size = 0x40000, scoped, tag = 'input window, operand 0']
    #allocation3 [shape = 's32[2]{0}', space=sflag, size = 0x8, scoped, tag = 'scoped memory for tpu_custom_call.1']
    #allocation4 [shape = 's32[2]{0}', space=sflag, size = 0x8, scoped, tag = 'scoped memory for tpu_custom_call.1']
    #allocation5 [shape = 'u8[32768]{0}', space=vmem, size = 0x8000, scoped, tag = 'input window, operand 1, single buffered']
    #allocation6 [shape = 's32[1]{0}', space=sflag, size = 0x4, scoped, tag = 'scoped memory for tpu_custom_call.1']
    #allocation7 [shape = 'u8[262144]{0}', space=vmem, size = 0x40000, scoped, tag = 'output window, operand 0']
    %9 = vsyncpa [#allocation3], 0
    %s10 = scalar_lea.sflag [#allocation3], 1
    %11 = vsyncpa %s10, 0
    %12 = vsyncpa [#allocation6], 0
    %13 = vsyncpa [#allocation4], 0
    %s14 = scalar_lea.sflag [#allocation4], 1
    %15 = vsyncpa %s14, 0
    loop: start=0, step=1, limit=6
    $region2: #{tpu_custom_call.1} parent=1 // loop_pre_header
      _
    $region3: #{tpu_custom_call.1} parent=1 // loop_header
      %s17 = sphi 0, %s21
      %p18 = scmp.ge.s32.totalorder %s17, 6
      %s27 = sphi 0, %s29
      %s30 = sphi 0, %s27
      %s31 = sphi 0, %s30
      %s47 = sphi 0, %s31
      %s51 = sphi 0, %s51
      %s53 = sphi 0, %s51
      %s54 = sphi 0, %s53
      %s68 = sphi 0, %s54
      %s72 = sphi 0, %s72
      %s74 = sphi 0, %s72
      %s75 = sphi 0, %s74
      %s89 = sphi 0, %s75
      %s93 = sphi 0, %s93
      %s95 = sphi 0, %s93
      %s96 = sphi 0, %s95
      %s110 = sphi 0, %s96
      %s116 = sphi 0, %s118
      %s119 = sphi 0, %s116
      %s120 = sphi 0, %s119
      %s136 = sphi 0, %s120
    $region4: #{tpu_custom_call.1} parent=1 // loop_header_branch
      %20 = sbr.rel (%p18) target = $region8
    $region5: #{tpu_custom_call.1} parent=1 // loop_body
      %s22 = ssub.s32 %s17, 1
      %s23 = ssub.s32 %s17, 2
      %s24 = sadd.s32 %s17, 1
      %s25 = ssub.s32 %s17, %s24
      %p26 = scmp.eq.s32.totalorder %s25, 0
      %s28 = sadd.s32 %s27, 1
      %s29 = scalar_select %p26, %s27, %s28
      %p32 = pneg %p26
      %p33 = scmp.eq.s32.totalorder %s17, 3
      %p34 = por %p32, %p33
      %p35 = scmp.ne.s32.totalorder %s27, %s30
      %p36 = scmp.eq.s32.totalorder %s17, 0
      %p37 = por %p35, %p36
      %p38 = scmp.ne.s32.totalorder %s27, %s30
      %p39 = scmp.eq.s32.totalorder %s22, 3
      %p40 = por %p38, %p39
      %p41 = scmp.ne.s32.totalorder %s30, %s31
      %p42 = scmp.eq.s32.totalorder %s22, 0
      %p43 = por %p41, %p42
      %p44 = scmp.ne.s32.totalorder %s30, %s31
      %p45 = scmp.eq.s32.totalorder %s23, 3
      %p46 = por %p44, %p45
      %p48 = scmp.ne.s32.totalorder %s31, %s47
      %p49 = scmp.eq.s32.totalorder %s23, 0
      %p50 = por %p48, %p49
      %s52 = sadd.s32 %s51, 1
      %p55 = scmp.eq.s32.totalorder %s17, 3
      %p56 = scmp.ne.s32.totalorder %s51, %s53
      %p57 = scmp.eq.s32.totalorder %s17, 0
      %p58 = por %p56, %p57
      %p59 = scmp.ne.s32.totalorder %s51, %s53
      %p60 = scmp.eq.s32.totalorder %s22, 3
      %p61 = por %p59, %p60
      %p62 = scmp.ne.s32.totalorder %s53, %s54
      %p63 = scmp.eq.s32.totalorder %s22, 0
      %p64 = por %p62, %p63
      %p65 = scmp.ne.s32.totalorder %s53, %s54
      %p66 = scmp.eq.s32.totalorder %s23, 3
      %p67 = por %p65, %p66
      %p69 = scmp.ne.s32.totalorder %s54, %s68
      %p70 = scmp.eq.s32.totalorder %s23, 0
      %p71 = por %p69, %p70
      %s73 = sadd.s32 %s72, 1
      %p76 = scmp.eq.s32.totalorder %s17, 3
      %p77 = scmp.ne.s32.totalorder %s72, %s74
      %p78 = scmp.eq.s32.totalorder %s17, 0
      %p79 = por %p77, %p78
      %p80 = scmp.ne.s32.totalorder %s72, %s74
      %p81 = scmp.eq.s32.totalorder %s22, 3
      %p82 = por %p80, %p81
      %p83 = scmp.ne.s32.totalorder %s74, %s75
      %p84 = scmp.eq.s32.totalorder %s22, 0
      %p85 = por %p83, %p84
      %p86 = scmp.ne.s32.totalorder %s74, %s75
      %p87 = scmp.eq.s32.totalorder %s23, 3
      %p88 = por %p86, %p87
      %p90 = scmp.ne.s32.totalorder %s75, %s89
      %p91 = scmp.eq.s32.totalorder %s23, 0
      %p92 = por %p90, %p91
      %s94 = sadd.s32 %s93, 1
      %p97 = scmp.eq.s32.totalorder %s17, 3
      %p98 = scmp.ne.s32.totalorder %s93, %s95
      %p99 = scmp.eq.s32.totalorder %s17, 0
      %p100 = por %p98, %p99
      %p101 = scmp.ne.s32.totalorder %s93, %s95
      %p102 = scmp.eq.s32.totalorder %s22, 3
      %p103 = por %p101, %p102
      %p104 = scmp.ne.s32.totalorder %s95, %s96
      %p105 = scmp.eq.s32.totalorder %s22, 0
      %p106 = por %p104, %p105
      %p107 = scmp.ne.s32.totalorder %s95, %s96
      %p108 = scmp.eq.s32.totalorder %s23, 3
      %p109 = por %p107, %p108
      %p111 = scmp.ne.s32.totalorder %s96, %s110
      %p112 = scmp.eq.s32.totalorder %s23, 0
      %p113 = por %p111, %p112
      %s114 = ssub.s32 %s17, %s24
      %p115 = scmp.eq.s32.totalorder %s114, 0
      %s117 = sadd.s32 %s116, 1
      %s118 = scalar_select %p115, %s116, %s117
      %p121 = pneg %p115
      %p122 = scmp.eq.s32.totalorder %s17, 3
      %p123 = por %p121, %p122
      %p124 = scmp.ne.s32.totalorder %s116, %s119
      %p125 = scmp.eq.s32.totalorder %s17, 0
      %p126 = por %p124, %p125
      %p127 = scmp.ne.s32.totalorder %s116, %s119
      %p128 = scmp.eq.s32.totalorder %s22, 3
      %p129 = por %p127, %p128
      %p130 = scmp.ne.s32.totalorder %s119, %s120
      %p131 = scmp.eq.s32.totalorder %s22, 0
      %p132 = por %p130, %p131
      %p133 = scmp.ne.s32.totalorder %s119, %s120
      %p134 = scmp.eq.s32.totalorder %s23, 3
      %p135 = por %p133, %p134
      %p137 = scmp.ne.s32.totalorder %s120, %s136
      %p138 = scmp.eq.s32.totalorder %s23, 0
      %p139 = por %p137, %p138
      %p140 = scmp.le.s32.totalorder 1, %s17
      %p141 = scmp.lt.s32.totalorder %s17, 5
      %p142 = pnand %p140, %p141
      %p143 = pneg %p142
      // Predicated region
      $region9: #{tpu_custom_call.1} parent=5 // pred_check
        _
      $region10: #{tpu_custom_call.1} parent=5 // pred_check_branch
        %145 = sbr.rel (%p142) target = $region12
      $region11: #{tpu_custom_call.1} parent=5 // pred_region
        %s146 = ssub.s32 %s17, 1
        // Predicated region
        $region13: #{tpu_custom_call.1} parent=11 // pred_check
          %p147 = pneg %p64
        $region14: #{tpu_custom_call.1} parent=11 // pred_check_branch
          %149 = sbr.rel (%p147) target = $region16
        $region15: #{tpu_custom_call.1} parent=11 // pred_region
          %s151 = ssub.s32 1024, 1024
          %152 = vsyncadd [#allocation6], %s151
          %s153 = sshll.u32 [#allocation5], 4
          %s154 = int_to_ptr.vmem [resolvable:$true] %s153
          %159 = dma.hbm_to_vmem [thread:$0]  %s1, 1024, %s154, [#allocation6], 64, 64, 4
        $region16: #{tpu_custom_call.1} parent=11 // pred_fallthru
          _
        // Predicated region
        $region17: #{tpu_custom_call.1} parent=11 // pred_check
          %p160 = pneg %p85
        $region18: #{tpu_custom_call.1} parent=11 // pred_check_branch
          %162 = sbr.rel (%p160) target = $region20
        $region19: #{tpu_custom_call.1} parent=11 // pred_region
          _
        $region20: #{tpu_custom_call.1} parent=11 // pred_fallthru
          _
        // Predicated region
        $region21: #{tpu_custom_call.1} parent=11 // pred_check
          %p163 = pneg %p106
        $region22: #{tpu_custom_call.1} parent=11 // pred_check_branch
          %165 = sbr.rel (%p163) target = $region24
        $region23: #{tpu_custom_call.1} parent=11 // pred_region
          _
        $region24: #{tpu_custom_call.1} parent=11 // pred_fallthru
          _
      $region12: #{tpu_custom_call.1} parent=5 // pred_fallthru
        _
      %p166 = scmp.lt.s32.totalorder %s17, 4
      // Predicated region
      $region25: #{tpu_custom_call.1} parent=5 // pred_check
        %p167 = pneg %p166
      $region26: #{tpu_custom_call.1} parent=5 // pred_check_branch
        %169 = sbr.rel (%p167) target = $region28
      $region27: #{tpu_custom_call.1} parent=5 // pred_region
        // Predicated region
        $region29: #{tpu_custom_call.1} parent=27 // pred_check
          %p170 = pneg %p37
        $region30: #{tpu_custom_call.1} parent=27 // pred_check_branch
          %172 = sbr.rel (%p170) target = $region32
        $region31: #{tpu_custom_call.1} parent=27 // pred_region
          %s173 = sand.u32 %s27, 1
          %s174 = scalar_lea.sflag [#allocation3], %s173
          %s175 = sand.u32 %s27, 1
          %s176 = smul.addr %s175, 256
          %s177 = scalar_lea.vmem [#allocation2], %s176
          %s178 = smul.u32 64, %s17
          %s180 = ssub.s32 4096, 4096
          %181 = vsyncadd %s174, %s180
          %s182 = smul.addr %s178, 64
          %s183 = scalar_lea.hbm %s0, %s182
          %s184 = sshll.u32 %s177, 4
          %s185 = int_to_ptr.vmem [resolvable:$true] %s184
          %190 = dma.hbm_to_vmem [thread:$0]  %s183, 4096, %s185, %s174, 64, 64, 4
        $region32: #{tpu_custom_call.1} parent=27 // pred_fallthru
          _
      $region28: #{tpu_custom_call.1} parent=5 // pred_fallthru
        _
      %p191 = scmp.le.s32.totalorder 1, %s17
      %p192 = scmp.lt.s32.totalorder %s17, 5
      %p193 = pnand %p191, %p192
      %p194 = pneg %p193
      // Predicated region
      $region33: #{tpu_custom_call.1} parent=5 // pred_check
        _
      $region34: #{tpu_custom_call.1} parent=5 // pred_check_branch
        %196 = sbr.rel (%p193) target = $region36
      $region35: #{tpu_custom_call.1} parent=5 // pred_region
        %s197 = ssub.s32 %s17, 1
        %s198 = sand.u32 %s30, 1
        %s199 = scalar_lea.sflag [#allocation3], %s198
        %s200 = sand.u32 %s30, 1
        %s201 = smul.addr %s200, 256
        %s202 = scalar_lea.vmem [#allocation2], %s201
        // Predicated region
        $region37: #{tpu_custom_call.1} parent=35 // pred_check
          %p203 = pneg %p43
        $region38: #{tpu_custom_call.1} parent=35 // pred_check_branch
          %205 = sbr.rel (%p203) target = $region40
        $region39: #{tpu_custom_call.1} parent=35 // pred_region
          %206 = dma.done %s199, 4096
        $region40: #{tpu_custom_call.1} parent=35 // pred_fallthru
          _
        // Predicated region
        $region41: #{tpu_custom_call.1} parent=35 // pred_check
          %p207 = pneg %p64
        $region42: #{tpu_custom_call.1} parent=35 // pred_check_branch
          %209 = sbr.rel (%p207) target = $region44
        $region43: #{tpu_custom_call.1} parent=35 // pred_region
          %210 = dma.done [#allocation6], 1024
        $region44: #{tpu_custom_call.1} parent=35 // pred_fallthru
          _
        %s211 = sand.u32 %s30, 1
        %s212 = scalar_lea.sflag [#allocation3], %s211
        %s213 = sand.u32 %s30, 1
        %s214 = smul.addr %s213, 256
        %s215 = scalar_lea.vmem [#allocation2], %s214
        %p216 = pneg %p43
        %p217 = pneg %p40
        %p218 = pneg %p64
        %p219 = pneg %p61
        %p220 = pneg %p85
        %p221 = pneg %p82
        %p222 = pneg %p106
        %p223 = pneg %p103
        %p224 = pneg %p132
        %p225 = pneg %p129
        %s226 = sand.u32 %s119, 1
        %s227 = scalar_lea.sflag [#allocation4], %s226
        %s228 = sand.u32 %s119, 1
        %s229 = smul.addr %s228, 256
        %s230 = scalar_lea.vmem [#allocation7], %s229
        %s231 = smul.u32 64, %s22
        %s232 = smul.u32 64, %s22
        %v234 = vld [vmem:[%s202] sm:$0xf]
        %v235 = vld [vmem:[%s202 + $0x4] sm:$0xf]
        %v236 = vld [vmem:[%s202 + $0x8] sm:$0xf]
        %v237 = vld [vmem:[%s202 + $0xc] sm:$0xf]
        %v238 = vld [vmem:[%s202 + $0x10] sm:$0xf]
        %v239 = vld [vmem:[%s202 + $0x14] sm:$0xf]
        %v240 = vld [vmem:[%s202 + $0x18] sm:$0xf]
        %v241 = vld [vmem:[%s202 + $0x1c] sm:$0xf]
        %v242 = vld [vmem:[%s202 + $0x20] sm:$0xf]
        %v243 = vld [vmem:[%s202 + $0x24] sm:$0xf]
        %v244 = vld [vmem:[%s202 + $0x28] sm:$0xf]
        %v245 = vld [vmem:[%s202 + $0x2c] sm:$0xf]
        %v246 = vld [vmem:[%s202 + $0x30] sm:$0xf]
        %v247 = vld [vmem:[%s202 + $0x34] sm:$0xf]
        %v248 = vld [vmem:[%s202 + $0x38] sm:$0xf]
        %v249 = vld [vmem:[%s202 + $0x3c] sm:$0xf]
        %v250 = vld [vmem:[%s202 + $0x40] sm:$0xf]
        %v251 = vld [vmem:[%s202 + $0x44] sm:$0xf]
        %v252 = vld [vmem:[%s202 + $0x48] sm:$0xf]
        %v253 = vld [vmem:[%s202 + $0x4c] sm:$0xf]
        %v254 = vld [vmem:[%s202 + $0x50] sm:$0xf]
        %v255 = vld [vmem:[%s202 + $0x54] sm:$0xf]
        %v256 = vld [vmem:[%s202 + $0x58] sm:$0xf]
        %v257 = vld [vmem:[%s202 + $0x5c] sm:$0xf]
        %v258 = vld [vmem:[%s202 + $0x60] sm:$0xf]
        %v259 = vld [vmem:[%s202 + $0x64] sm:$0xf]
        %v260 = vld [vmem:[%s202 + $0x68] sm:$0xf]
        %v261 = vld [vmem:[%s202 + $0x6c] sm:$0xf]
        %v262 = vld [vmem:[%s202 + $0x70] sm:$0xf]
        %v263 = vld [vmem:[%s202 + $0x74] sm:$0xf]
        %v264 = vld [vmem:[%s202 + $0x78] sm:$0xf]
        %v265 = vld [vmem:[%s202 + $0x7c] sm:$0xf]
        %v266 = vld [vmem:[%s202 + $0x80] sm:$0xf]
        %v267 = vld [vmem:[%s202 + $0x84] sm:$0xf]
        %v268 = vld [vmem:[%s202 + $0x88] sm:$0xf]
        %v269 = vld [vmem:[%s202 + $0x8c] sm:$0xf]
        %v270 = vld [vmem:[%s202 + $0x90] sm:$0xf]
        %v271 = vld [vmem:[%s202 + $0x94] sm:$0xf]
        %v272 = vld [vmem:[%s202 + $0x98] sm:$0xf]
        %v273 = vld [vmem:[%s202 + $0x9c] sm:$0xf]
        %v274 = vld [vmem:[%s202 + $0xa0] sm:$0xf]
        %v275 = vld [vmem:[%s202 + $0xa4] sm:$0xf]
        %v276 = vld [vmem:[%s202 + $0xa8] sm:$0xf]
        %v277 = vld [vmem:[%s202 + $0xac] sm:$0xf]
        %v278 = vld [vmem:[%s202 + $0xb0] sm:$0xf]
        %v279 = vld [vmem:[%s202 + $0xb4] sm:$0xf]
        %v280 = vld [vmem:[%s202 + $0xb8] sm:$0xf]
        %v281 = vld [vmem:[%s202 + $0xbc] sm:$0xf]
        %v282 = vld [vmem:[%s202 + $0xc0] sm:$0xf]
        %v283 = vld [vmem:[%s202 + $0xc4] sm:$0xf]
        %v284 = vld [vmem:[%s202 + $0xc8] sm:$0xf]
        %v285 = vld [vmem:[%s202 + $0xcc] sm:$0xf]
        %v286 = vld [vmem:[%s202 + $0xd0] sm:$0xf]
        %v287 = vld [vmem:[%s202 + $0xd4] sm:$0xf]
        %v288 = vld [vmem:[%s202 + $0xd8] sm:$0xf]
        %v289 = vld [vmem:[%s202 + $0xdc] sm:$0xf]
        %v290 = vld [vmem:[%s202 + $0xe0] sm:$0xf]
        %v291 = vld [vmem:[%s202 + $0xe4] sm:$0xf]
        %v292 = vld [vmem:[%s202 + $0xe8] sm:$0xf]
        %v293 = vld [vmem:[%s202 + $0xec] sm:$0xf]
        %v294 = vld [vmem:[%s202 + $0xf0] sm:$0xf]
        %v295 = vld [vmem:[%s202 + $0xf4] sm:$0xf]
        %v296 = vld [vmem:[%s202 + $0xf8] sm:$0xf]
        %v297 = vld [vmem:[%s202 + $0xfc] sm:$0xf]
        %v298 = vld [vmem:[#allocation5] sm:$0xf]
        %v299 = vld [vmem:[#allocation5 + $0x4] sm:$0xf]
        %v300 = vld [vmem:[#allocation5 + $0x8] sm:$0xf]
        %v301 = vld [vmem:[#allocation5 + $0xc] sm:$0xf]
        %v302 = vld [vmem:[#allocation5 + $0x10] sm:$0xf]
        %v303 = vld [vmem:[#allocation5 + $0x14] sm:$0xf]
        %v304 = vld [vmem:[#allocation5 + $0x18] sm:$0xf]
        %v305 = vld [vmem:[#allocation5 + $0x1c] sm:$0xf]
        %v306 = vld [vmem:[#allocation5 + $0x20] sm:$0xf]
        %v307 = vld [vmem:[#allocation5 + $0x24] sm:$0xf]
        %v308 = vld [vmem:[#allocation5 + $0x28] sm:$0xf]
        %v309 = vld [vmem:[#allocation5 + $0x2c] sm:$0xf]
        %v310 = vld [vmem:[#allocation5 + $0x30] sm:$0xf]
        %v311 = vld [vmem:[#allocation5 + $0x34] sm:$0xf]
        %v312 = vld [vmem:[#allocation5 + $0x38] sm:$0xf]
        %v313 = vld [vmem:[#allocation5 + $0x3c] sm:$0xf]
        %v378 = vunpack.c.l.b16 %v234
        %v379 = vunpack.c.l.b16 %v235
        %v380 = vunpack.c.l.b16 %v236
        %v381 = vunpack.c.l.b16 %v237
        %v382 = vunpack.c.l.b16 %v238
        %v383 = vunpack.c.l.b16 %v239
        %v384 = vunpack.c.l.b16 %v240
        %v385 = vunpack.c.l.b16 %v241
        %v386 = vunpack.c.l.b16 %v242
        %v387 = vunpack.c.l.b16 %v243
        %v388 = vunpack.c.l.b16 %v244
        %v389 = vunpack.c.l.b16 %v245
        %v390 = vunpack.c.l.b16 %v246
        %v391 = vunpack.c.l.b16 %v247
        %v392 = vunpack.c.l.b16 %v248
        %v393 = vunpack.c.l.b16 %v249
        %v394 = vunpack.c.l.b16 %v250
        %v395 = vunpack.c.l.b16 %v251
        %v396 = vunpack.c.l.b16 %v252
        %v397 = vunpack.c.l.b16 %v253
        %v398 = vunpack.c.l.b16 %v254
        %v399 = vunpack.c.l.b16 %v255
        %v400 = vunpack.c.l.b16 %v256
        %v401 = vunpack.c.l.b16 %v257
        %v402 = vunpack.c.l.b16 %v258
        %v403 = vunpack.c.l.b16 %v259
        %v404 = vunpack.c.l.b16 %v260
        %v405 = vunpack.c.l.b16 %v261
        %v406 = vunpack.c.l.b16 %v262
        %v407 = vunpack.c.l.b16 %v263
        %v408 = vunpack.c.l.b16 %v264
        %v409 = vunpack.c.l.b16 %v265
        %v410 = vunpack.c.l.b16 %v266
        %v411 = vunpack.c.l.b16 %v267
        %v412 = vunpack.c.l.b16 %v268
        %v413 = vunpack.c.l.b16 %v269
        %v414 = vunpack.c.l.b16 %v270
        %v415 = vunpack.c.l.b16 %v271
        %v416 = vunpack.c.l.b16 %v272
        %v417 = vunpack.c.l.b16 %v273
        %v418 = vunpack.c.l.b16 %v274
        %v419 = vunpack.c.l.b16 %v275
        %v420 = vunpack.c.l.b16 %v276
        %v421 = vunpack.c.l.b16 %v277
        %v422 = vunpack.c.l.b16 %v278
        %v423 = vunpack.c.l.b16 %v279
        %v424 = vunpack.c.l.b16 %v280
        %v425 = vunpack.c.l.b16 %v281
        %v426 = vunpack.c.l.b16 %v282
        %v427 = vunpack.c.l.b16 %v283
        %v428 = vunpack.c.l.b16 %v284
        %v429 = vunpack.c.l.b16 %v285
        %v430 = vunpack.c.l.b16 %v286
        %v431 = vunpack.c.l.b16 %v287
        %v432 = vunpack.c.l.b16 %v288
        %v433 = vunpack.c.l.b16 %v289
        %v434 = vunpack.c.l.b16 %v290
        %v435 = vunpack.c.l.b16 %v291
        %v436 = vunpack.c.l.b16 %v292
        %v437 = vunpack.c.l.b16 %v293
        %v438 = vunpack.c.l.b16 %v294
        %v439 = vunpack.c.l.b16 %v295
        %v440 = vunpack.c.l.b16 %v296
        %v441 = vunpack.c.l.b16 %v297
        %v442 = vpack.c.b16 %v379, %v378
        %v443 = vpack.c.b16 %v381, %v380
        %v444 = vpack.c.b16 %v383, %v382
        %v445 = vpack.c.b16 %v385, %v384
        %v446 = vpack.c.b16 %v387, %v386
        %v447 = vpack.c.b16 %v389, %v388
        %v448 = vpack.c.b16 %v391, %v390
        %v449 = vpack.c.b16 %v393, %v392
        %v450 = vpack.c.b16 %v395, %v394
        %v451 = vpack.c.b16 %v397, %v396
        %v452 = vpack.c.b16 %v399, %v398
        %v453 = vpack.c.b16 %v401, %v400
        %v454 = vpack.c.b16 %v403, %v402
        %v455 = vpack.c.b16 %v405, %v404
        %v456 = vpack.c.b16 %v407, %v406
        %v457 = vpack.c.b16 %v409, %v408
        %v458 = vpack.c.b16 %v411, %v410
        %v459 = vpack.c.b16 %v413, %v412
        %v460 = vpack.c.b16 %v415, %v414
        %v461 = vpack.c.b16 %v417, %v416
        %v462 = vpack.c.b16 %v419, %v418
        %v463 = vpack.c.b16 %v421, %v420
        %v464 = vpack.c.b16 %v423, %v422
        %v465 = vpack.c.b16 %v425, %v424
        %v466 = vpack.c.b16 %v427, %v426
        %v467 = vpack.c.b16 %v429, %v428
        %v468 = vpack.c.b16 %v431, %v430
        %v469 = vpack.c.b16 %v433, %v432
        %v470 = vpack.c.b16 %v435, %v434
        %v471 = vpack.c.b16 %v437, %v436
        %v472 = vpack.c.b16 %v439, %v438
        %v473 = vpack.c.b16 %v441, %v440
        %v522 = vunpack.c.l.b16 %v298
        %v523 = vunpack.c.l.b16 %v299
        %v524 = vunpack.c.l.b16 %v300
        %v525 = vunpack.c.l.b16 %v301
        %v526 = vunpack.c.l.b16 %v302
        %v527 = vunpack.c.l.b16 %v303
        %v528 = vunpack.c.l.b16 %v304
        %v529 = vunpack.c.l.b16 %v305
        %v530 = vunpack.c.l.b16 %v306
        %v531 = vunpack.c.l.b16 %v307
        %v532 = vunpack.c.l.b16 %v308
        %v533 = vunpack.c.l.b16 %v309
        %v534 = vunpack.c.l.b16 %v310
        %v535 = vunpack.c.l.b16 %v311
        %v536 = vunpack.c.l.b16 %v312
        %v537 = vunpack.c.l.b16 %v313
        %v538 = vpack.c.b16 %v523, %v522
        %v539 = vpack.c.b16 %v525, %v524
        %v540 = vpack.c.b16 %v527, %v526
        %v541 = vpack.c.b16 %v529, %v528
        %v542 = vpack.c.b16 %v531, %v530
        %v543 = vpack.c.b16 %v533, %v532
        %v544 = vpack.c.b16 %v535, %v534
        %v545 = vpack.c.b16 %v537, %v536
        %554 = vmatprep.subr.bf16.mxu0 0
        %555 = vmatpush1.bf16.msra.mxu0 %v538
        %556 = vmatprep.subr.bf16.mxu0 0
        %557 = vmatpush1.bf16.msra.mxu0 %v539
        %558 = vmatprep.subr.bf16.mxu0 0
        %559 = vmatpush1.bf16.msra.mxu0 %v540
        %560 = vmatprep.subr.bf16.mxu0 0
        %561 = vmatpush1.bf16.msra.mxu0 %v541
        %562 = vmatprep.subr.bf16.mxu0 0
        %563 = vmatpush1.bf16.msra.mxu0 %v542
        %564 = vmatprep.subr.bf16.mxu0 0
        %565 = vmatpush1.bf16.msra.mxu0 %v543
        %566 = vmatprep.subr.bf16.mxu0 0
        %567 = vmatpush1.bf16.msra.mxu0 %v544
        %568 = vmatprep.subr.bf16.mxu0 0
        %569 = vmatpush1.bf16.msra.mxu0 %v545
        %570 = vmatprep.subr.bf16.mxu0 0
        %571 = vmatpush1.bf16.msra.mxu0 0
        %572 = vmatprep.subr.bf16.mxu0 0
        %573 = vmatpush1.bf16.msra.mxu0 0
        %574 = vmatprep.subr.bf16.mxu0 0
        %575 = vmatpush1.bf16.msra.mxu0 0
        %576 = vmatprep.subr.bf16.mxu0 0
        %577 = vmatpush1.bf16.msra.mxu0 0
        %578 = vmatprep.subr.bf16.mxu0 0
        %579 = vmatpush1.bf16.msra.mxu0 0
        %580 = vmatprep.subr.bf16.mxu0 0
        %581 = vmatpush1.bf16.msra.mxu0 0
        %582 = vmatprep.subr.bf16.mxu0 0
        %583 = vmatpush1.bf16.msra.mxu0 0
        %584 = vmatprep.subr.bf16.mxu0 0
        %585 = vmatpush1.bf16.msra.mxu0 0
        %586 = vmatprep.mubr.bf16.mxu0 0
        %587 = vmatmul.mubr.bf16.gmra.mrb[0].mxu0 %v442
        %v588 = vpop.f32.mrb[0].mxu0
        %v589 = vadd.f32 0.0, %v588
        %v590 = vpop.f32.mrb[0].mxu0
        %v591 = vpop.f32.mrb[0].mxu0
        %v592 = vadd.f32 0.0, %v591
        %v593 = vpop.f32.mrb[0].mxu0
        %594 = vmatprep.mubr.bf16.mxu0 0
        %595 = vmatmul.mubr.bf16.gmra.mrb[0].mxu0 %v443
        %v596 = vpop.f32.mrb[0].mxu0
        %v597 = vadd.f32 0.0, %v596
        %v598 = vpop.f32.mrb[0].mxu0
        %v599 = vpop.f32.mrb[0].mxu0
        %v600 = vadd.f32 0.0, %v599
        %v601 = vpop.f32.mrb[0].mxu0
        %602 = vmatprep.mubr.bf16.mxu0 0
        %603 = vmatmul.mubr.bf16.gmra.mrb[0].mxu0 %v444
        %v604 = vpop.f32.mrb[0].mxu0
        %v605 = vadd.f32 0.0, %v604
        %v606 = vpop.f32.mrb[0].mxu0
        %v607 = vpop.f32.mrb[0].mxu0
        %v608 = vadd.f32 0.0, %v607
        %v609 = vpop.f32.mrb[0].mxu0
        %610 = vmatprep.mubr.bf16.mxu0 0
        %611 = vmatmul.mubr.bf16.gmra.mrb[0].mxu0 %v445
        %v612 = vpop.f32.mrb[0].mxu0
        %v613 = vadd.f32 0.0, %v612
        %v614 = vpop.f32.mrb[0].mxu0
        %v615 = vpop.f32.mrb[0].mxu0
        %v616 = vadd.f32 0.0, %v615
        %v617 = vpop.f32.mrb[0].mxu0
        %618 = vmatprep.mubr.bf16.mxu0 0
        %619 = vmatmul.mubr.bf16.gmra.mrb[0].mxu0 %v446
        %v620 = vpop.f32.mrb[0].mxu0
        %v621 = vadd.f32 0.0, %v620
        %v622 = vpop.f32.mrb[0].mxu0
        %v623 = vpop.f32.mrb[0].mxu0
        %v624 = vadd.f32 0.0, %v623
        %v625 = vpop.f32.mrb[0].mxu0
        %626 = vmatprep.mubr.bf16.mxu0 0
        %627 = vmatmul.mubr.bf16.gmra.mrb[0].mxu0 %v447
        %v628 = vpop.f32.mrb[0].mxu0
        %v629 = vadd.f32 0.0, %v628
        %v630 = vpop.f32.mrb[0].mxu0
        %v631 = vpop.f32.mrb[0].mxu0
        %v632 = vadd.f32 0.0, %v631
        %v633 = vpop.f32.mrb[0].mxu0
        %634 = vmatprep.mubr.bf16.mxu0 0
        %635 = vmatmul.mubr.bf16.gmra.mrb[0].mxu0 %v448
        %v636 = vpop.f32.mrb[0].mxu0
        %v637 = vadd.f32 0.0, %v636
        %v638 = vpop.f32.mrb[0].mxu0
        %v639 = vpop.f32.mrb[0].mxu0
        %v640 = vadd.f32 0.0, %v639
        %v641 = vpop.f32.mrb[0].mxu0
        %642 = vmatprep.mubr.bf16.mxu0 0
        %643 = vmatmul.mubr.bf16.gmra.mrb[0].mxu0 %v449
        %v644 = vpop.f32.mrb[0].mxu0
        %v645 = vadd.f32 0.0, %v644
        %v646 = vpop.f32.mrb[0].mxu0
        %v647 = vpop.f32.mrb[0].mxu0
        %v648 = vadd.f32 0.0, %v647
        %v649 = vpop.f32.mrb[0].mxu0
        %650 = vmatprep.mubr.bf16.mxu0 0
        %651 = vmatmul.mubr.bf16.gmra.mrb[0].mxu0 %v450
        %v652 = vpop.f32.mrb[0].mxu0
        %v653 = vadd.f32 0.0, %v652
        %v654 = vpop.f32.mrb[0].mxu0
        %v655 = vpop.f32.mrb[0].mxu0
        %v656 = vadd.f32 0.0, %v655
        %v657 = vpop.f32.mrb[0].mxu0
        %658 = vmatprep.mubr.bf16.mxu0 0
        %659 = vmatmul.mubr.bf16.gmra.mrb[0].mxu0 %v451
        %v660 = vpop.f32.mrb[0].mxu0
        %v661 = vadd.f32 0.0, %v660
        %v662 = vpop.f32.mrb[0].mxu0
        %v663 = vpop.f32.mrb[0].mxu0
        %v664 = vadd.f32 0.0, %v663
        %v665 = vpop.f32.mrb[0].mxu0
        %666 = vmatprep.mubr.bf16.mxu0 0
        %667 = vmatmul.mubr.bf16.gmra.mrb[0].mxu0 %v452
        %v668 = vpop.f32.mrb[0].mxu0
        %v669 = vadd.f32 0.0, %v668
        %v670 = vpop.f32.mrb[0].mxu0
        %v671 = vpop.f32.mrb[0].mxu0
        %v672 = vadd.f32 0.0, %v671
        %v673 = vpop.f32.mrb[0].mxu0
        %674 = vmatprep.mubr.bf16.mxu0 0
        %675 = vmatmul.mubr.bf16.gmra.mrb[0].mxu0 %v453
        %v676 = vpop.f32.mrb[0].mxu0
        %v677 = vadd.f32 0.0, %v676
        %v678 = vpop.f32.mrb[0].mxu0
        %v679 = vpop.f32.mrb[0].mxu0
        %v680 = vadd.f32 0.0, %v679
        %v681 = vpop.f32.mrb[0].mxu0
        %682 = vmatprep.mubr.bf16.mxu0 0
        %683 = vmatmul.mubr.bf16.gmra.mrb[0].mxu0 %v454
        %v684 = vpop.f32.mrb[0].mxu0
        %v685 = vadd.f32 0.0, %v684
        %v686 = vpop.f32.mrb[0].mxu0
        %v687 = vpop.f32.mrb[0].mxu0
        %v688 = vadd.f32 0.0, %v687
        %v689 = vpop.f32.mrb[0].mxu0
        %690 = vmatprep.mubr.bf16.mxu0 0
        %691 = vmatmul.mubr.bf16.gmra.mrb[0].mxu0 %v455
        %v692 = vpop.f32.mrb[0].mxu0
        %v693 = vadd.f32 0.0, %v692
        %v694 = vpop.f32.mrb[0].mxu0
        %v695 = vpop.f32.mrb[0].mxu0
        %v696 = vadd.f32 0.0, %v695
        %v697 = vpop.f32.mrb[0].mxu0
        %698 = vmatprep.mubr.bf16.mxu0 0
        %699 = vmatmul.mubr.bf16.gmra.mrb[0].mxu0 %v456
        %v700 = vpop.f32.mrb[0].mxu0
        %v701 = vadd.f32 0.0, %v700
        %v702 = vpop.f32.mrb[0].mxu0
        %v703 = vpop.f32.mrb[0].mxu0
        %v704 = vadd.f32 0.0, %v703
        %v705 = vpop.f32.mrb[0].mxu0
        %706 = vmatprep.mubr.bf16.mxu0 0
        %707 = vmatmul.mubr.bf16.gmra.mrb[0].mxu0 %v457
        %v708 = vpop.f32.mrb[0].mxu0
        %v709 = vadd.f32 0.0, %v708
        %v710 = vpop.f32.mrb[0].mxu0
        %v711 = vpop.f32.mrb[0].mxu0
        %v712 = vadd.f32 0.0, %v711
        %v713 = vpop.f32.mrb[0].mxu0
        %714 = vmatprep.mubr.bf16.mxu0 0
        %715 = vmatmul.mubr.bf16.gmra.mrb[0].mxu0 %v458
        %v716 = vpop.f32.mrb[0].mxu0
        %v717 = vadd.f32 0.0, %v716
        %v718 = vpop.f32.mrb[0].mxu0
        %v719 = vpop.f32.mrb[0].mxu0
        %v720 = vadd.f32 0.0, %v719
        %v721 = vpop.f32.mrb[0].mxu0
        %722 = vmatprep.mubr.bf16.mxu0 0
        %723 = vmatmul.mubr.bf16.gmra.mrb[0].mxu0 %v459
        %v724 = vpop.f32.mrb[0].mxu0
        %v725 = vadd.f32 0.0, %v724
        %v726 = vpop.f32.mrb[0].mxu0
        %v727 = vpop.f32.mrb[0].mxu0
        %v728 = vadd.f32 0.0, %v727
        %v729 = vpop.f32.mrb[0].mxu0
        %730 = vmatprep.mubr.bf16.mxu0 0
        %731 = vmatmul.mubr.bf16.gmra.mrb[0].mxu0 %v460
        %v732 = vpop.f32.mrb[0].mxu0
        %v733 = vadd.f32 0.0, %v732
        %v734 = vpop.f32.mrb[0].mxu0
        %v735 = vpop.f32.mrb[0].mxu0
        %v736 = vadd.f32 0.0, %v735
        %v737 = vpop.f32.mrb[0].mxu0
        %738 = vmatprep.mubr.bf16.mxu0 0
        %739 = vmatmul.mubr.bf16.gmra.mrb[0].mxu0 %v461
        %v740 = vpop.f32.mrb[0].mxu0
        %v741 = vadd.f32 0.0, %v740
        %v742 = vpop.f32.mrb[0].mxu0
        %v743 = vpop.f32.mrb[0].mxu0
        %v744 = vadd.f32 0.0, %v743
        %v745 = vpop.f32.mrb[0].mxu0
        %746 = vmatprep.mubr.bf16.mxu0 0
        %747 = vmatmul.mubr.bf16.gmra.mrb[0].mxu0 %v462
        %v748 = vpop.f32.mrb[0].mxu0
        %v749 = vadd.f32 0.0, %v748
        %v750 = vpop.f32.mrb[0].mxu0
        %v751 = vpop.f32.mrb[0].mxu0
        %v752 = vadd.f32 0.0, %v751
        %v753 = vpop.f32.mrb[0].mxu0
        %754 = vmatprep.mubr.bf16.mxu0 0
        %755 = vmatmul.mubr.bf16.gmra.mrb[0].mxu0 %v463
        %v756 = vpop.f32.mrb[0].mxu0
        %v757 = vadd.f32 0.0, %v756
        %v758 = vpop.f32.mrb[0].mxu0
        %v759 = vpop.f32.mrb[0].mxu0
        %v760 = vadd.f32 0.0, %v759
        %v761 = vpop.f32.mrb[0].mxu0
        %762 = vmatprep.mubr.bf16.mxu0 0
        %763 = vmatmul.mubr.bf16.gmra.mrb[0].mxu0 %v464
        %v764 = vpop.f32.mrb[0].mxu0
        %v765 = vadd.f32 0.0, %v764
        %v766 = vpop.f32.mrb[0].mxu0
        %v767 = vpop.f32.mrb[0].mxu0
        %v768 = vadd.f32 0.0, %v767
        %v769 = vpop.f32.mrb[0].mxu0
        %770 = vmatprep.mubr.bf16.mxu0 0
        %771 = vmatmul.mubr.bf16.gmra.mrb[0].mxu0 %v465
        %v772 = vpop.f32.mrb[0].mxu0
        %v773 = vadd.f32 0.0, %v772
        %v774 = vpop.f32.mrb[0].mxu0
        %v775 = vpop.f32.mrb[0].mxu0
        %v776 = vadd.f32 0.0, %v775
        %v777 = vpop.f32.mrb[0].mxu0
        %778 = vmatprep.mubr.bf16.mxu0 0
        %779 = vmatmul.mubr.bf16.gmra.mrb[0].mxu0 %v466
        %v780 = vpop.f32.mrb[0].mxu0
        %v781 = vadd.f32 0.0, %v780
        %v782 = vpop.f32.mrb[0].mxu0
        %v783 = vpop.f32.mrb[0].mxu0
        %v784 = vadd.f32 0.0, %v783
        %v785 = vpop.f32.mrb[0].mxu0
        %786 = vmatprep.mubr.bf16.mxu0 0
        %787 = vmatmul.mubr.bf16.gmra.mrb[0].mxu0 %v467
        %v788 = vpop.f32.mrb[0].mxu0
        %v789 = vadd.f32 0.0, %v788
        %v790 = vpop.f32.mrb[0].mxu0
        %v791 = vpop.f32.mrb[0].mxu0
        %v792 = vadd.f32 0.0, %v791
        %v793 = vpop.f32.mrb[0].mxu0
        %794 = vmatprep.mubr.bf16.mxu0 0
        %795 = vmatmul.mubr.bf16.gmra.mrb[0].mxu0 %v468
        %v796 = vpop.f32.mrb[0].mxu0
        %v797 = vadd.f32 0.0, %v796
        %v798 = vpop.f32.mrb[0].mxu0
        %v799 = vpop.f32.mrb[0].mxu0
        %v800 = vadd.f32 0.0, %v799
        %v801 = vpop.f32.mrb[0].mxu0
        %802 = vmatprep.mubr.bf16.mxu0 0
        %803 = vmatmul.mubr.bf16.gmra.mrb[0].mxu0 %v469
        %v804 = vpop.f32.mrb[0].mxu0
        %v805 = vadd.f32 0.0, %v804
        %v806 = vpop.f32.mrb[0].mxu0
        %v807 = vpop.f32.mrb[0].mxu0
        %v808 = vadd.f32 0.0, %v807
        %v809 = vpop.f32.mrb[0].mxu0
        %810 = vmatprep.mubr.bf16.mxu0 0
        %811 = vmatmul.mubr.bf16.gmra.mrb[0].mxu0 %v470
        %v812 = vpop.f32.mrb[0].mxu0
        %v813 = vadd.f32 0.0, %v812
        %v814 = vpop.f32.mrb[0].mxu0
        %v815 = vpop.f32.mrb[0].mxu0
        %v816 = vadd.f32 0.0, %v815
        %v817 = vpop.f32.mrb[0].mxu0
        %818 = vmatprep.mubr.bf16.mxu0 0
        %819 = vmatmul.mubr.bf16.gmra.mrb[0].mxu0 %v471
        %v820 = vpop.f32.mrb[0].mxu0
        %v821 = vadd.f32 0.0, %v820
        %v822 = vpop.f32.mrb[0].mxu0
        %v823 = vpop.f32.mrb[0].mxu0
        %v824 = vadd.f32 0.0, %v823
        %v825 = vpop.f32.mrb[0].mxu0
        %826 = vmatprep.mubr.bf16.mxu0 0
        %827 = vmatmul.mubr.bf16.gmra.mrb[0].mxu0 %v472
        %v828 = vpop.f32.mrb[0].mxu0
        %v829 = vadd.f32 0.0, %v828
        %v830 = vpop.f32.mrb[0].mxu0
        %v831 = vpop.f32.mrb[0].mxu0
        %v832 = vadd.f32 0.0, %v831
        %v833 = vpop.f32.mrb[0].mxu0
        %834 = vmatprep.mubr.bf16.mxu0 0
        %835 = vmatmul.mubr.bf16.gmra.mrb[0].mxu0 %v473
        %v836 = vpop.f32.mrb[0].mxu0
        %v837 = vadd.f32 0.0, %v836
        %v838 = vpop.f32.mrb[0].mxu0
        %v839 = vpop.f32.mrb[0].mxu0
        %v840 = vadd.f32 0.0, %v839
        %v841 = vpop.f32.mrb[0].mxu0
        %842 = vdwg.mxu0
        %v843 = vld [vmem:[%s2] sm:$0x1]
        %v845 = vlaneseq
        %v846 = vshrl.u32 %v845, 7
        %v847 = vsub.s32 0, %v846
        %v848 = vrot.slane %v843, %v847
        %v850 = vmul.f32 %v589, %v848
        %v851 = vmul.f32 %v592, %v848
        %v852 = vmul.f32 %v597, %v848
        %v853 = vmul.f32 %v600, %v848
        %v854 = vmul.f32 %v605, %v848
        %v855 = vmul.f32 %v608, %v848
        %v856 = vmul.f32 %v613, %v848
        %v857 = vmul.f32 %v616, %v848
        %v858 = vmul.f32 %v621, %v848
        %v859 = vmul.f32 %v624, %v848
        %v860 = vmul.f32 %v629, %v848
        %v861 = vmul.f32 %v632, %v848
        %v862 = vmul.f32 %v637, %v848
        %v863 = vmul.f32 %v640, %v848
        %v864 = vmul.f32 %v645, %v848
        %v865 = vmul.f32 %v648, %v848
        %v866 = vmul.f32 %v653, %v848
        %v867 = vmul.f32 %v656, %v848
        %v868 = vmul.f32 %v661, %v848
        %v869 = vmul.f32 %v664, %v848
        %v870 = vmul.f32 %v669, %v848
        %v871 = vmul.f32 %v672, %v848
        %v872 = vmul.f32 %v677, %v848
        %v873 = vmul.f32 %v680, %v848
        %v874 = vmul.f32 %v685, %v848
        %v875 = vmul.f32 %v688, %v848
        %v876 = vmul.f32 %v693, %v848
        %v877 = vmul.f32 %v696, %v848
        %v878 = vmul.f32 %v701, %v848
        %v879 = vmul.f32 %v704, %v848
        %v880 = vmul.f32 %v709, %v848
        %v881 = vmul.f32 %v712, %v848
        %v882 = vmul.f32 %v717, %v848
        %v883 = vmul.f32 %v720, %v848
        %v884 = vmul.f32 %v725, %v848
        %v885 = vmul.f32 %v728, %v848
        %v886 = vmul.f32 %v733, %v848
        %v887 = vmul.f32 %v736, %v848
        %v888 = vmul.f32 %v741, %v848
        %v889 = vmul.f32 %v744, %v848
        %v890 = vmul.f32 %v749, %v848
        %v891 = vmul.f32 %v752, %v848
        %v892 = vmul.f32 %v757, %v848
        %v893 = vmul.f32 %v760, %v848
        %v894 = vmul.f32 %v765, %v848
        %v895 = vmul.f32 %v768, %v848
        %v896 = vmul.f32 %v773, %v848
        %v897 = vmul.f32 %v776, %v848
        %v898 = vmul.f32 %v781, %v848
        %v899 = vmul.f32 %v784, %v848
        %v900 = vmul.f32 %v789, %v848
        %v901 = vmul.f32 %v792, %v848
        %v902 = vmul.f32 %v797, %v848
        %v903 = vmul.f32 %v800, %v848
        %v904 = vmul.f32 %v805, %v848
        %v905 = vmul.f32 %v808, %v848
        %v906 = vmul.f32 %v813, %v848
        %v907 = vmul.f32 %v816, %v848
        %v908 = vmul.f32 %v821, %v848
        %v909 = vmul.f32 %v824, %v848
        %v910 = vmul.f32 %v829, %v848
        %v911 = vmul.f32 %v832, %v848
        %v912 = vmul.f32 %v837, %v848
        %v913 = vmul.f32 %v840, %v848
        %v914 = vld [vmem:[%s3] sm:$0x1]
        %v916 = vlaneseq
        %v917 = vshrl.u32 %v916, 7
        %v918 = vsub.s32 0, %v917
        %v919 = vrot.slane %v914, %v918
        %v921 = vadd.f32 %v850, %v919
        %v922 = vadd.f32 %v851, %v919
        %v923 = vadd.f32 %v852, %v919
        %v924 = vadd.f32 %v853, %v919
        %v925 = vadd.f32 %v854, %v919
        %v926 = vadd.f32 %v855, %v919
        %v927 = vadd.f32 %v856, %v919
        %v928 = vadd.f32 %v857, %v919
        %v929 = vadd.f32 %v858, %v919
        %v930 = vadd.f32 %v859, %v919
        %v931 = vadd.f32 %v860, %v919
        %v932 = vadd.f32 %v861, %v919
        %v933 = vadd.f32 %v862, %v919
        %v934 = vadd.f32 %v863, %v919
        %v935 = vadd.f32 %v864, %v919
        %v936 = vadd.f32 %v865, %v919
        %v937 = vadd.f32 %v866, %v919
        %v938 = vadd.f32 %v867, %v919
        %v939 = vadd.f32 %v868, %v919
        %v940 = vadd.f32 %v869, %v919
        %v941 = vadd.f32 %v870, %v919
        %v942 = vadd.f32 %v871, %v919
        %v943 = vadd.f32 %v872, %v919
        %v944 = vadd.f32 %v873, %v919
        %v945 = vadd.f32 %v874, %v919
        %v946 = vadd.f32 %v875, %v919
        %v947 = vadd.f32 %v876, %v919
        %v948 = vadd.f32 %v877, %v919
        %v949 = vadd.f32 %v878, %v919
        %v950 = vadd.f32 %v879, %v919
        %v951 = vadd.f32 %v880, %v919
        %v952 = vadd.f32 %v881, %v919
        %v953 = vadd.f32 %v882, %v919
        %v954 = vadd.f32 %v883, %v919
        %v955 = vadd.f32 %v884, %v919
        %v956 = vadd.f32 %v885, %v919
        %v957 = vadd.f32 %v886, %v919
        %v958 = vadd.f32 %v887, %v919
        %v959 = vadd.f32 %v888, %v919
        %v960 = vadd.f32 %v889, %v919
        %v961 = vadd.f32 %v890, %v919
        %v962 = vadd.f32 %v891, %v919
        %v963 = vadd.f32 %v892, %v919
        %v964 = vadd.f32 %v893, %v919
        %v965 = vadd.f32 %v894, %v919
        %v966 = vadd.f32 %v895, %v919
        %v967 = vadd.f32 %v896, %v919
        %v968 = vadd.f32 %v897, %v919
        %v969 = vadd.f32 %v898, %v919
        %v970 = vadd.f32 %v899, %v919
        %v971 = vadd.f32 %v900, %v919
        %v972 = vadd.f32 %v901, %v919
        %v973 = vadd.f32 %v902, %v919
        %v974 = vadd.f32 %v903, %v919
        %v975 = vadd.f32 %v904, %v919
        %v976 = vadd.f32 %v905, %v919
        %v977 = vadd.f32 %v906, %v919
        %v978 = vadd.f32 %v907, %v919
        %v979 = vadd.f32 %v908, %v919
        %v980 = vadd.f32 %v909, %v919
        %v981 = vadd.f32 %v910, %v919
        %v982 = vadd.f32 %v911, %v919
        %v983 = vadd.f32 %v912, %v919
        %v984 = vadd.f32 %v913, %v919
        %v985 = vmax.f32 %v921, 0.0
        %v986 = vmax.f32 %v922, 0.0
        %v987 = vmax.f32 %v923, 0.0
        %v988 = vmax.f32 %v924, 0.0
        %v989 = vmax.f32 %v925, 0.0
        %v990 = vmax.f32 %v926, 0.0
        %v991 = vmax.f32 %v927, 0.0
        %v992 = vmax.f32 %v928, 0.0
        %v993 = vmax.f32 %v929, 0.0
        %v994 = vmax.f32 %v930, 0.0
        %v995 = vmax.f32 %v931, 0.0
        %v996 = vmax.f32 %v932, 0.0
        %v997 = vmax.f32 %v933, 0.0
        %v998 = vmax.f32 %v934, 0.0
        %v999 = vmax.f32 %v935, 0.0
        %v1000 = vmax.f32 %v936, 0.0
        %v1001 = vmax.f32 %v937, 0.0
        %v1002 = vmax.f32 %v938, 0.0
        %v1003 = vmax.f32 %v939, 0.0
        %v1004 = vmax.f32 %v940, 0.0
        %v1005 = vmax.f32 %v941, 0.0
        %v1006 = vmax.f32 %v942, 0.0
        %v1007 = vmax.f32 %v943, 0.0
        %v1008 = vmax.f32 %v944, 0.0
        %v1009 = vmax.f32 %v945, 0.0
        %v1010 = vmax.f32 %v946, 0.0
        %v1011 = vmax.f32 %v947, 0.0
        %v1012 = vmax.f32 %v948, 0.0
        %v1013 = vmax.f32 %v949, 0.0
        %v1014 = vmax.f32 %v950, 0.0
        %v1015 = vmax.f32 %v951, 0.0
        %v1016 = vmax.f32 %v952, 0.0
        %v1017 = vmax.f32 %v953, 0.0
        %v1018 = vmax.f32 %v954, 0.0
        %v1019 = vmax.f32 %v955, 0.0
        %v1020 = vmax.f32 %v956, 0.0
        %v1021 = vmax.f32 %v957, 0.0
        %v1022 = vmax.f32 %v958, 0.0
        %v1023 = vmax.f32 %v959, 0.0
        %v1024 = vmax.f32 %v960, 0.0
        %v1025 = vmax.f32 %v961, 0.0
        %v1026 = vmax.f32 %v962, 0.0
        %v1027 = vmax.f32 %v963, 0.0
        %v1028 = vmax.f32 %v964, 0.0
        %v1029 = vmax.f32 %v965, 0.0
        %v1030 = vmax.f32 %v966, 0.0
        %v1031 = vmax.f32 %v967, 0.0
        %v1032 = vmax.f32 %v968, 0.0
        %v1033 = vmax.f32 %v969, 0.0
        %v1034 = vmax.f32 %v970, 0.0
        %v1035 = vmax.f32 %v971, 0.0
        %v1036 = vmax.f32 %v972, 0.0
        %v1037 = vmax.f32 %v973, 0.0
        %v1038 = vmax.f32 %v974, 0.0
        %v1039 = vmax.f32 %v975, 0.0
        %v1040 = vmax.f32 %v976, 0.0
        %v1041 = vmax.f32 %v977, 0.0
        %v1042 = vmax.f32 %v978, 0.0
        %v1043 = vmax.f32 %v979, 0.0
        %v1044 = vmax.f32 %v980, 0.0
        %v1045 = vmax.f32 %v981, 0.0
        %v1046 = vmax.f32 %v982, 0.0
        %v1047 = vmax.f32 %v983, 0.0
        %v1048 = vmax.f32 %v984, 0.0
        %v1049 = vpack.c.bf16 %v986, %v985
        %v1050 = vpack.c.bf16 %v988, %v987
        %v1051 = vpack.c.bf16 %v990, %v989
        %v1052 = vpack.c.bf16 %v992, %v991
        %v1053 = vpack.c.bf16 %v994, %v993
        %v1054 = vpack.c.bf16 %v996, %v995
        %v1055 = vpack.c.bf16 %v998, %v997
        %v1056 = vpack.c.bf16 %v1000, %v999
        %v1057 = vpack.c.bf16 %v1002, %v1001
        %v1058 = vpack.c.bf16 %v1004, %v1003
        %v1059 = vpack.c.bf16 %v1006, %v1005
        %v1060 = vpack.c.bf16 %v1008, %v1007
        %v1061 = vpack.c.bf16 %v1010, %v1009
        %v1062 = vpack.c.bf16 %v1012, %v1011
        %v1063 = vpack.c.bf16 %v1014, %v1013
        %v1064 = vpack.c.bf16 %v1016, %v1015
        %v1065 = vpack.c.bf16 %v1018, %v1017
        %v1066 = vpack.c.bf16 %v1020, %v1019
        %v1067 = vpack.c.bf16 %v1022, %v1021
        %v1068 = vpack.c.bf16 %v1024, %v1023
        %v1069 = vpack.c.bf16 %v1026, %v1025
        %v1070 = vpack.c.bf16 %v1028, %v1027
        %v1071 = vpack.c.bf16 %v1030, %v1029
        %v1072 = vpack.c.bf16 %v1032, %v1031
        %v1073 = vpack.c.bf16 %v1034, %v1033
        %v1074 = vpack.c.bf16 %v1036, %v1035
        %v1075 = vpack.c.bf16 %v1038, %v1037
        %v1076 = vpack.c.bf16 %v1040, %v1039
        %v1077 = vpack.c.bf16 %v1042, %v1041
        %v1078 = vpack.c.bf16 %v1044, %v1043
        %v1079 = vpack.c.bf16 %v1046, %v1045
        %v1080 = vpack.c.bf16 %v1048, %v1047
        %v1113 = vunpack.c.l.b16 %v1049
        %v1114 = vunpack.c.h.b16 %v1049
        %v1115 = vunpack.c.l.b16 %v1050
        %v1116 = vunpack.c.h.b16 %v1050
        %v1117 = vunpack.c.l.b16 %v1051
        %v1118 = vunpack.c.h.b16 %v1051
        %v1119 = vunpack.c.l.b16 %v1052
        %v1120 = vunpack.c.h.b16 %v1052
        %v1121 = vunpack.c.l.b16 %v1053
        %v1122 = vunpack.c.h.b16 %v1053
        %v1123 = vunpack.c.l.b16 %v1054
        %v1124 = vunpack.c.h.b16 %v1054
        %v1125 = vunpack.c.l.b16 %v1055
        %v1126 = vunpack.c.h.b16 %v1055
        %v1127 = vunpack.c.l.b16 %v1056
        %v1128 = vunpack.c.h.b16 %v1056
        %v1129 = vunpack.c.l.b16 %v1057
        %v1130 = vunpack.c.h.b16 %v1057
        %v1131 = vunpack.c.l.b16 %v1058
        %v1132 = vunpack.c.h.b16 %v1058
        %v1133 = vunpack.c.l.b16 %v1059
        %v1134 = vunpack.c.h.b16 %v1059
        %v1135 = vunpack.c.l.b16 %v1060
        %v1136 = vunpack.c.h.b16 %v1060
        %v1137 = vunpack.c.l.b16 %v1061
        %v1138 = vunpack.c.h.b16 %v1061
        %v1139 = vunpack.c.l.b16 %v1062
        %v1140 = vunpack.c.h.b16 %v1062
        %v1141 = vunpack.c.l.b16 %v1063
        %v1142 = vunpack.c.h.b16 %v1063
        %v1143 = vunpack.c.l.b16 %v1064
        %v1144 = vunpack.c.h.b16 %v1064
        %v1145 = vunpack.c.l.b16 %v1065
        %v1146 = vunpack.c.h.b16 %v1065
        %v1147 = vunpack.c.l.b16 %v1066
        %v1148 = vunpack.c.h.b16 %v1066
        %v1149 = vunpack.c.l.b16 %v1067
        %v1150 = vunpack.c.h.b16 %v1067
        %v1151 = vunpack.c.l.b16 %v1068
        %v1152 = vunpack.c.h.b16 %v1068
        %v1153 = vunpack.c.l.b16 %v1069
        %v1154 = vunpack.c.h.b16 %v1069
        %v1155 = vunpack.c.l.b16 %v1070
        %v1156 = vunpack.c.h.b16 %v1070
        %v1157 = vunpack.c.l.b16 %v1071
        %v1158 = vunpack.c.h.b16 %v1071
        %v1159 = vunpack.c.l.b16 %v1072
        %v1160 = vunpack.c.h.b16 %v1072
        %v1161 = vunpack.c.l.b16 %v1073
        %v1162 = vunpack.c.h.b16 %v1073
        %v1163 = vunpack.c.l.b16 %v1074
        %v1164 = vunpack.c.h.b16 %v1074
        %v1165 = vunpack.c.l.b16 %v1075
        %v1166 = vunpack.c.h.b16 %v1075
        %v1167 = vunpack.c.l.b16 %v1076
        %v1168 = vunpack.c.h.b16 %v1076
        %v1169 = vunpack.c.l.b16 %v1077
        %v1170 = vunpack.c.h.b16 %v1077
        %v1171 = vunpack.c.l.b16 %v1078
        %v1172 = vunpack.c.h.b16 %v1078
        %v1173 = vunpack.c.l.b16 %v1079
        %v1174 = vunpack.c.h.b16 %v1079
        %v1175 = vunpack.c.l.b16 %v1080
        %v1176 = vunpack.c.h.b16 %v1080
        %v1177 = vpack.c.b16 %v1113, %v1113
        %v1178 = vpack.c.b16 %v1114, %v1114
        %v1179 = vpack.c.b16 %v1115, %v1115
        %v1180 = vpack.c.b16 %v1116, %v1116
        %v1181 = vpack.c.b16 %v1117, %v1117
        %v1182 = vpack.c.b16 %v1118, %v1118
        %v1183 = vpack.c.b16 %v1119, %v1119
        %v1184 = vpack.c.b16 %v1120, %v1120
        %v1185 = vpack.c.b16 %v1121, %v1121
        %v1186 = vpack.c.b16 %v1122, %v1122
        %v1187 = vpack.c.b16 %v1123, %v1123
        %v1188 = vpack.c.b16 %v1124, %v1124
        %v1189 = vpack.c.b16 %v1125, %v1125
        %v1190 = vpack.c.b16 %v1126, %v1126
        %v1191 = vpack.c.b16 %v1127, %v1127
        %v1192 = vpack.c.b16 %v1128, %v1128
        %v1193 = vpack.c.b16 %v1129, %v1129
        %v1194 = vpack.c.b16 %v1130, %v1130
        %v1195 = vpack.c.b16 %v1131, %v1131
        %v1196 = vpack.c.b16 %v1132, %v1132
        %v1197 = vpack.c.b16 %v1133, %v1133
        %v1198 = vpack.c.b16 %v1134, %v1134
        %v1199 = vpack.c.b16 %v1135, %v1135
        %v1200 = vpack.c.b16 %v1136, %v1136
        %v1201 = vpack.c.b16 %v1137, %v1137
        %v1202 = vpack.c.b16 %v1138, %v1138
        %v1203 = vpack.c.b16 %v1139, %v1139
        %v1204 = vpack.c.b16 %v1140, %v1140
        %v1205 = vpack.c.b16 %v1141, %v1141
        %v1206 = vpack.c.b16 %v1142, %v1142
        %v1207 = vpack.c.b16 %v1143, %v1143
        %v1208 = vpack.c.b16 %v1144, %v1144
        %v1209 = vpack.c.b16 %v1145, %v1145
        %v1210 = vpack.c.b16 %v1146, %v1146
        %v1211 = vpack.c.b16 %v1147, %v1147
        %v1212 = vpack.c.b16 %v1148, %v1148
        %v1213 = vpack.c.b16 %v1149, %v1149
        %v1214 = vpack.c.b16 %v1150, %v1150
        %v1215 = vpack.c.b16 %v1151, %v1151
        %v1216 = vpack.c.b16 %v1152, %v1152
        %v1217 = vpack.c.b16 %v1153, %v1153
        %v1218 = vpack.c.b16 %v1154, %v1154
        %v1219 = vpack.c.b16 %v1155, %v1155
        %v1220 = vpack.c.b16 %v1156, %v1156
        %v1221 = vpack.c.b16 %v1157, %v1157
        %v1222 = vpack.c.b16 %v1158, %v1158
        %v1223 = vpack.c.b16 %v1159, %v1159
        %v1224 = vpack.c.b16 %v1160, %v1160
        %v1225 = vpack.c.b16 %v1161, %v1161
        %v1226 = vpack.c.b16 %v1162, %v1162
        %v1227 = vpack.c.b16 %v1163, %v1163
        %v1228 = vpack.c.b16 %v1164, %v1164
        %v1229 = vpack.c.b16 %v1165, %v1165
        %v1230 = vpack.c.b16 %v1166, %v1166
        %v1231 = vpack.c.b16 %v1167, %v1167
        %v1232 = vpack.c.b16 %v1168, %v1168
        %v1233 = vpack.c.b16 %v1169, %v1169
        %v1234 = vpack.c.b16 %v1170, %v1170
        %v1235 = vpack.c.b16 %v1171, %v1171
        %v1236 = vpack.c.b16 %v1172, %v1172
        %v1237 = vpack.c.b16 %v1173, %v1173
        %v1238 = vpack.c.b16 %v1174, %v1174
        %v1239 = vpack.c.b16 %v1175, %v1175
        %v1240 = vpack.c.b16 %v1176, %v1176
        %1305 = vst [vmem:[%s230] sm:$0xf] %v1177
        %1306 = vst [vmem:[%s230 + $0x4] sm:$0xf] %v1178
        %1307 = vst [vmem:[%s230 + $0x8] sm:$0xf] %v1179
        %1308 = vst [vmem:[%s230 + $0xc] sm:$0xf] %v1180
        %1309 = vst [vmem:[%s230 + $0x10] sm:$0xf] %v1181
        %1310 = vst [vmem:[%s230 + $0x14] sm:$0xf] %v1182
        %1311 = vst [vmem:[%s230 + $0x18] sm:$0xf] %v1183
        %1312 = vst [vmem:[%s230 + $0x1c] sm:$0xf] %v1184
        %1313 = vst [vmem:[%s230 + $0x20] sm:$0xf] %v1185
        %1314 = vst [vmem:[%s230 + $0x24] sm:$0xf] %v1186
        %1315 = vst [vmem:[%s230 + $0x28] sm:$0xf] %v1187
        %1316 = vst [vmem:[%s230 + $0x2c] sm:$0xf] %v1188
        %1317 = vst [vmem:[%s230 + $0x30] sm:$0xf] %v1189
        %1318 = vst [vmem:[%s230 + $0x34] sm:$0xf] %v1190
        %1319 = vst [vmem:[%s230 + $0x38] sm:$0xf] %v1191
        %1320 = vst [vmem:[%s230 + $0x3c] sm:$0xf] %v1192
        %1321 = vst [vmem:[%s230 + $0x40] sm:$0xf] %v1193
        %1322 = vst [vmem:[%s230 + $0x44] sm:$0xf] %v1194
        %1323 = vst [vmem:[%s230 + $0x48] sm:$0xf] %v1195
        %1324 = vst [vmem:[%s230 + $0x4c] sm:$0xf] %v1196
        %1325 = vst [vmem:[%s230 + $0x50] sm:$0xf] %v1197
        %1326 = vst [vmem:[%s230 + $0x54] sm:$0xf] %v1198
        %1327 = vst [vmem:[%s230 + $0x58] sm:$0xf] %v1199
        %1328 = vst [vmem:[%s230 + $0x5c] sm:$0xf] %v1200
        %1329 = vst [vmem:[%s230 + $0x60] sm:$0xf] %v1201
        %1330 = vst [vmem:[%s230 + $0x64] sm:$0xf] %v1202
        %1331 = vst [vmem:[%s230 + $0x68] sm:$0xf] %v1203
        %1332 = vst [vmem:[%s230 + $0x6c] sm:$0xf] %v1204
        %1333 = vst [vmem:[%s230 + $0x70] sm:$0xf] %v1205
        %1334 = vst [vmem:[%s230 + $0x74] sm:$0xf] %v1206
        %1335 = vst [vmem:[%s230 + $0x78] sm:$0xf] %v1207
        %1336 = vst [vmem:[%s230 + $0x7c] sm:$0xf] %v1208
        %1337 = vst [vmem:[%s230 + $0x80] sm:$0xf] %v1209
        %1338 = vst [vmem:[%s230 + $0x84] sm:$0xf] %v1210
        %1339 = vst [vmem:[%s230 + $0x88] sm:$0xf] %v1211
        %1340 = vst [vmem:[%s230 + $0x8c] sm:$0xf] %v1212
        %1341 = vst [vmem:[%s230 + $0x90] sm:$0xf] %v1213
        %1342 = vst [vmem:[%s230 + $0x94] sm:$0xf] %v1214
        %1343 = vst [vmem:[%s230 + $0x98] sm:$0xf] %v1215
        %1344 = vst [vmem:[%s230 + $0x9c] sm:$0xf] %v1216
        %1345 = vst [vmem:[%s230 + $0xa0] sm:$0xf] %v1217
        %1346 = vst [vmem:[%s230 + $0xa4] sm:$0xf] %v1218
        %1347 = vst [vmem:[%s230 + $0xa8] sm:$0xf] %v1219
        %1348 = vst [vmem:[%s230 + $0xac] sm:$0xf] %v1220
        %1349 = vst [vmem:[%s230 + $0xb0] sm:$0xf] %v1221
        %1350 = vst [vmem:[%s230 + $0xb4] sm:$0xf] %v1222
        %1351 = vst [vmem:[%s230 + $0xb8] sm:$0xf] %v1223
        %1352 = vst [vmem:[%s230 + $0xbc] sm:$0xf] %v1224
        %1353 = vst [vmem:[%s230 + $0xc0] sm:$0xf] %v1225
        %1354 = vst [vmem:[%s230 + $0xc4] sm:$0xf] %v1226
        %1355 = vst [vmem:[%s230 + $0xc8] sm:$0xf] %v1227
        %1356 = vst [vmem:[%s230 + $0xcc] sm:$0xf] %v1228
        %1357 = vst [vmem:[%s230 + $0xd0] sm:$0xf] %v1229
        %1358 = vst [vmem:[%s230 + $0xd4] sm:$0xf] %v1230
        %1359 = vst [vmem:[%s230 + $0xd8] sm:$0xf] %v1231
        %1360 = vst [vmem:[%s230 + $0xdc] sm:$0xf] %v1232
        %1361 = vst [vmem:[%s230 + $0xe0] sm:$0xf] %v1233
        %1362 = vst [vmem:[%s230 + $0xe4] sm:$0xf] %v1234
        %1363 = vst [vmem:[%s230 + $0xe8] sm:$0xf] %v1235
        %1364 = vst [vmem:[%s230 + $0xec] sm:$0xf] %v1236
        %1365 = vst [vmem:[%s230 + $0xf0] sm:$0xf] %v1237
        %1366 = vst [vmem:[%s230 + $0xf4] sm:$0xf] %v1238
        %1367 = vst [vmem:[%s230 + $0xf8] sm:$0xf] %v1239
        %1368 = vst [vmem:[%s230 + $0xfc] sm:$0xf] %v1240
        %s1369 = sand.u32 %s119, 1
        %s1370 = scalar_lea.sflag [#allocation4], %s1369
        %s1371 = sand.u32 %s119, 1
        %s1372 = smul.addr %s1371, 256
        %s1373 = scalar_lea.vmem [#allocation7], %s1372
        // Predicated region
        $region45: #{tpu_custom_call.1} parent=35 // pred_check
          %p1374 = pneg %p129
        $region46: #{tpu_custom_call.1} parent=35 // pred_check_branch
          %1376 = sbr.rel (%p1374) target = $region48
        $region47: #{tpu_custom_call.1} parent=35 // pred_region
          %s1377 = smul.u32 64, %s22
          %s1379 = ssub.s32 4096, 4096
          %1380 = vsyncadd %s1370, %s1379
          %s1381 = smul.addr %s1377, 64
          %s1382 = scalar_lea.hbm %s4, %s1381
          %s1383 = sshll.u32 %s1373, 4
          %s1384 = int_to_ptr.vmem [resolvable:$true] %s1383
          %1389 = dma.vmem_to_hbm [thread:$0]  %s1384, 4096, %s1382, %s1370, 64, 64, 4
        $region48: #{tpu_custom_call.1} parent=35 // pred_fallthru
          _
      $region36: #{tpu_custom_call.1} parent=5 // pred_fallthru
        _
      %p1390 = scmp.le.s32.totalorder 2, %s17
      // Predicated region
      $region49: #{tpu_custom_call.1} parent=5 // pred_check
        %p1391 = pneg %p1390
      $region50: #{tpu_custom_call.1} parent=5 // pred_check_branch
        %1393 = sbr.rel (%p1391) target = $region52
      $region51: #{tpu_custom_call.1} parent=5 // pred_region
        %s1394 = ssub.s32 %s17, 2
        // Predicated region
        $region53: #{tpu_custom_call.1} parent=51 // pred_check
          %p1395 = pneg %p135
        $region54: #{tpu_custom_call.1} parent=51 // pred_check_branch
          %1397 = sbr.rel (%p1395) target = $region56
        $region55: #{tpu_custom_call.1} parent=51 // pred_region
          %s1398 = sand.u32 %s120, 1
          %s1399 = scalar_lea.sflag [#allocation4], %s1398
          %s1400 = sand.u32 %s120, 1
          %s1401 = smul.addr %s1400, 256
          %s1402 = scalar_lea.vmem [#allocation7], %s1401
          %1403 = dma.done %s1399, 4096
        $region56: #{tpu_custom_call.1} parent=51 // pred_fallthru
          _
      $region52: #{tpu_custom_call.1} parent=5 // pred_fallthru
        _
    $region6: #{tpu_custom_call.1} parent=1 // loop_footer
      %s21 = sadd.s32 1, %s17
    $region7: #{tpu_custom_call.1} parent=1 // loop_footer_branch
      %16 = sbr.rel target = $region3
    $region8: #{tpu_custom_call.1} parent=1 // loop_exit
      _
    %1404 = vsyncpa [#allocation3], 1
    %s1405 = scalar_lea.sflag [#allocation3], 1
    %1406 = vsyncpa %s1405, 1
    %1407 = vsyncpa [#allocation6], 1
    %1408 = vsyncpa [#allocation4], 1
    %s1409 = scalar_lea.sflag [#allocation4], 1
    %1410 = vsyncpa %s1409, 1

</llo_original>
